<compile_context>
chip_gen: v6e
topology: v6e:2x2x1
jax: 0.10.0
libtpu: 0.0.40
codegen_flags: <defaults>
</compile_context>

<pallas_src>
import functools
import math

import jax
import jax.numpy as jnp
from jax.experimental import pallas as pl
from jax.experimental.pallas import tpu as pltpu


# ----------------------------- Pallas kernel ------------------------------- #

def _mstcn_kernel(x_ref, w_ref, o_ref, *, seq_len):
    """Fused MSTCN forward on a channels-first lane block.

    x_ref : (Cp, M)                      activations, M lanes (time-minor)
    w_ref : (L, Cp, (k_max+1)*Cp)        merged tap-stacked weights + bias col
    o_ref : (Cp, M)                      relu output of the last layer
    """
    Cp, M = x_ref.shape
    n_layers = w_ref.shape[0]
    k_max = w_ref.shape[2] // Cp - 1          # last Cp-block is the bias block

    # Per-lane time index within its sequence (sequences are contiguous and
    # time-minor along lanes; the lane tile is a multiple of seq_len).
    t_idx = jax.lax.broadcasted_iota(jnp.int32, (Cp, M), 1) % seq_len
    # Constant block with ones in row 0: contracted against the bias column of
    # the merged weight it folds the bias into the per-layer matmul.
    ones_blk = jnp.where(
        jax.lax.broadcasted_iota(jnp.int32, (Cp, M), 0) == 0, 1.0, 0.0)

    h = x_ref[...]                            # already f32
    for layer in range(n_layers):             # static unroll over layers
        dil = 2 ** layer
        blocks = []
        for m in range(k_max):                # static unroll over taps
            s = m * dil                       # causal shift (static int)
            if s == 0:
                blocks.append(h)
            elif s >= seq_len:
                blocks.append(jnp.zeros((Cp, M), jnp.float32))
            else:
                # Shift along lanes; zero where the shift crosses a sequence
                # start (wrap-around lanes always have t_idx < s -> masked).
                blocks.append(
                    jnp.where(t_idx >= s, pltpu.roll(h, shift=s, axis=1), 0.0))
        blocks.append(ones_blk)
        x_stack = jnp.concatenate(blocks, axis=0)    # ((k_max+1)*Cp, M)
        acc = jnp.dot(w_ref[layer], x_stack,
                      preferred_element_type=jnp.float32)
        # ReLU; the 3-branch concat is implicit in the merged-weight row order.
        h = jnp.maximum(acc, 0.0)

    o_ref[...] = h


# ------------------------------ MSTCN wrapper ------------------------------ #

def _merge_params(params, kernel_list, itcn_d, c_pad):
    """Merge the 3 per-branch convs of each layer into one tap-stacked weight
    [c_pad, (k_max+1)*c_pad] with the bias folded into the last column block;
    stack all layers -> [L, c_pad, (k_max+1)*c_pad]."""
    c_out = itcn_d // 3
    k_max = max(kernel_list)
    w_layers = []
    for ws, bs in params:
        w_m = jnp.zeros((c_pad, (k_max + 1) * c_pad), jnp.float32)
        for i, k in enumerate(kernel_list):
            rows = slice(i * c_out, (i + 1) * c_out)
            for m in range(k):
                j = k - 1 - m                 # tap j <-> shift m*dilation
                w_m = w_m.at[rows, m * c_pad:m * c_pad + itcn_d].set(ws[i][j].T)
        b = jnp.concatenate([b_.reshape(c_out) for b_ in bs])
        w_m = w_m.at[:itcn_d, k_max * c_pad].set(b)      # bias column
        w_layers.append(w_m)
    return jnp.stack(w_layers)


def mstcn_forward(x, params, kernel_list, *, max_lane_tile=2048):
    """MSTCN.forward.

    x : [batch, n_neurons, t_repetition, itcn_d]
    returns [batch, t_repetition, n_neurons, itcn_d]
    """
    B, Nn, T, C = x.shape
    assert C % 3 == 0, "itcn_d must be divisible by 3"
    Cp = max(8, ((C + 7) // 8) * 8)           # pad channels to a sublane tile
    M = B * Nn * T
    w_all = _merge_params(params, kernel_list, C, Cp)

    # Lane-dense channels-first slab: [Cp, B*Nn*T] (time-minor along lanes).
    x_cm = jnp.transpose(x, (3, 0, 1, 2)).reshape(C, M).astype(jnp.float32)
    x_cm = jnp.pad(x_cm, ((0, Cp - C), (0, 0)))

    # Lane tile: multiple of both 128 (vreg lanes) and T (no sequence may
    # straddle a block boundary).  Pad M up to a whole number of tiles with
    # zero "fake sequences" (pad amount is a multiple of T by construction).
    base = 128 * T // math.gcd(128, T)
    tile = base
    while tile * 2 <= max_lane_tile and tile < M:
        tile *= 2
    Mp = ((M + tile - 1) // tile) * tile
    if Mp != M:
        x_cm = jnp.pad(x_cm, ((0, 0), (0, Mp - M)))

    y_cm = pl.pallas_call(
        functools.partial(_mstcn_kernel, seq_len=T),
        out_shape=jax.ShapeDtypeStruct((Cp, Mp), jnp.float32),
        grid_spec=pltpu.PrefetchScalarGridSpec(
            num_scalar_prefetch=0,
            grid=(Mp // tile,),
            in_specs=[
                pl.BlockSpec((Cp, tile), lambda i: (0, i)),
                pl.BlockSpec(w_all.shape, lambda i: (0, 0, 0)),  # VMEM-resident
            ],
            out_specs=pl.BlockSpec((Cp, tile), lambda i: (0, i)),
        ),
        compiler_params=pltpu.CompilerParams(
            dimension_semantics=("parallel",),        # 2 TCs on v7x
            vmem_limit_bytes=32 * 1024 * 1024,
        ),
    )(x_cm, w_all)

    y = y_cm[:C, :M].reshape(C, B, Nn, T)
    # TODO(synk): if the consumer accepts channels-first [C, B*Nn*T] directly,
    # drop this transpose (layout plumbing only).
    return jnp.transpose(y, (1, 3, 2, 0)).astype(x.dtype)   # [B, T, Nn, C]


def init_params(key, itcn_d, kernel_list, n_layers):
    """Deterministic synthetic weights.

    Per layer, per conv i: weight [k_i, C_in, C_out] (PyTorch [C_out, C_in, k]
    transposed to tap-major), bias [1, C_out], with C_out = itcn_d // 3.
    """
    c_out = itcn_d // 3
    params = []
    for _ in range(n_layers):
        ws, bs = [], []
        for k in kernel_list:
            key, kw, kb = jax.random.split(key, 3)
            ws.append(0.3 * jax.random.normal(kw, (k, itcn_d, c_out), jnp.float32))
            bs.append(0.1 * jax.random.normal(kb, (1, c_out), jnp.float32))
        params.append((ws, bs))
    return params


# ---------------------------- pure-JAX reference --------------------------- #

def mstcn_reference(x, params, kernel_list):
    B, Nn, T, C = x.shape
    h = x.reshape(B * Nn, T, C).astype(jnp.float32)
    for layer_idx, (ws, bs) in enumerate(params):
        d = 2 ** layer_idx
        outs = []
        for w, b, k in zip(ws, bs, kernel_list):
            acc = jnp.zeros((h.shape[0], T, w.shape[2]), jnp.float32) + b
            for j in range(k):
                s = (k - 1 - j) * d
                xs = jnp.pad(h, ((0, 0), (s, 0), (0, 0)))[:, :T, :]
                acc = acc + jnp.einsum("ntc,cd->ntd", xs, w[j])
            outs.append(acc)
        h = jnp.maximum(jnp.concatenate(outs, axis=-1), 0.0)
    y = h.reshape(B, Nn, T, C)
    return jnp.transpose(y, (0, 2, 1, 3))


# ----------------------------------- main ---------------------------------- #

if __name__ == "__main__":
    # cfg: itcn_d=6 (divisible by 3), t_repetition=16, n_neurons=4,
    #      kernel_list=[2, 3, 5]; n_layers=2; batch=2  ->  N*T = 128 lanes.
    batch, n_neurons, t_repetition, itcn_d = 2, 4, 16, 6
    kernel_list = (2, 3, 5)
    n_layers = 2

    key = jax.random.PRNGKey(0)
    kx, kp = jax.random.split(key)
    x = jax.random.normal(kx, (batch, n_neurons, t_repetition, itcn_d), jnp.float32)
    params = init_params(kp, itcn_d, kernel_list, n_layers)

    fwd = jax.jit(functools.partial(mstcn_forward, kernel_list=kernel_list))
    out = jax.block_until_ready(fwd(x, params))

    ref = jax.block_until_ready(mstcn_reference(x, params, kernel_list))
    assert out.shape == (batch, t_repetition, n_neurons, itcn_d), out.shape
    assert jnp.allclose(out, ref, atol=1e-5, rtol=1e-5), "mismatch vs reference"

    print("KERNEL_OK")
</pallas_src>

<mosaic_0001>
module attributes {stable_mosaic.version = 11 : i64} {
  func.func @_mstcn_kernel(%arg0: i32, %arg1: memref<8x128xf32, #tpu.memory_space<vmem>>, %arg2: memref<2x8x48xf32, #tpu.memory_space<vmem>>, %arg3: memref<8x128xf32, #tpu.memory_space<vmem>>) attributes {dimension_semantics = [#tpu.dimension_semantics<parallel>], iteration_bounds = array<i64: 1>, scalar_prefetch = 0 : i64, scratch_operands = 0 : i64, tpu.core_type = #tpu.core_type<tc>, window_params = [{transform_indices = @transform_0, window_bounds = array<i64: 8, 128>}, {pipeline_mode = #tpu.pipeline_mode<synchronous>, transform_indices = @transform_1, window_bounds = array<i64: 2, 8, 48>}, {transform_indices = @transform_2, window_bounds = array<i64: 8, 128>}]} {
    %0 = tpu.iota {dimensions = array<i32: 1>} : vector<8x128xi32>
    %c16_i32 = arith.constant 16 : i32
    %c0_i32 = arith.constant 0 : i32
    %1 = arith.cmpi eq, %c16_i32, %c0_i32 : i32
    %c1_i32 = arith.constant 1 : i32
    %2 = arith.select %1, %c1_i32, %c16_i32 : i32
    %3 = vector.broadcast %2 : i32 to vector<8x128xi32>
    %4 = arith.remsi %0, %3 : vector<8x128xi32>
    %c0_i32_0 = arith.constant 0 : i32
    %5 = vector.broadcast %c0_i32_0 : i32 to vector<8x128xi32>
    %6 = arith.cmpi ne, %4, %5 : vector<8x128xi32>
    %c0_i32_1 = arith.constant 0 : i32
    %7 = vector.broadcast %c0_i32_1 : i32 to vector<8x128xi32>
    %8 = arith.cmpi slt, %4, %7 : vector<8x128xi32>
    %c0_i32_2 = arith.constant 0 : i32
    %9 = arith.cmpi slt, %2, %c0_i32_2 : i32
    %10 = vector.broadcast %9 : i1 to vector<8x128xi1>
    %11 = vector.broadcast %10 : vector<8x128xi1> to vector<8x128xi1>
    %12 = arith.xori %8, %11 : vector<8x128xi1>
    %13 = arith.andi %12, %6 : vector<8x128xi1>
    %14 = vector.broadcast %2 : i32 to vector<8x128xi32>
    %15 = arith.addi %4, %14 : vector<8x128xi32>
    %16 = arith.select %13, %15, %4 : vector<8x128xi1>, vector<8x128xi32>
    %17 = tpu.iota {dimensions = array<i32: 0>} : vector<8x128xi32>
    %c0_i32_3 = arith.constant 0 : i32
    %18 = vector.broadcast %c0_i32_3 : i32 to vector<8x128xi32>
    %19 = arith.cmpi eq, %17, %18 : vector<8x128xi32>
    %cst = arith.constant 1.000000e+00 : f32
    %cst_4 = arith.constant 0.000000e+00 : f32
    %20 = vector.broadcast %cst : f32 to vector<8x128xf32>
    %21 = vector.broadcast %cst_4 : f32 to vector<8x128xf32>
    %22 = arith.select %19, %20, %21 : vector<8x128xi1>, vector<8x128xf32>
    %c0 = arith.constant 0 : index
    %c0_5 = arith.constant 0 : index
    %23 = vector.load %arg1[%c0, %c0_5] : memref<8x128xf32, #tpu.memory_space<vmem>>, vector<8x128xf32>
    %c1_i32_6 = arith.constant 1 : i32
    %24 = vector.broadcast %c1_i32_6 : i32 to vector<8x128xi32>
    %25 = arith.cmpi sge, %16, %24 : vector<8x128xi32>
    %c1_i32_7 = arith.constant 1 : i32
    %26 = tpu.dynamic_rotate %23 by %c1_i32_7 dim 1 : vector<8x128xf32>, i32 -> vector<8x128xf32>
    %cst_8 = arith.constant 0.000000e+00 : f32
    %27 = vector.broadcast %cst_8 : f32 to vector<8x128xf32>
    %28 = arith.select %25, %26, %27 : vector<8x128xi1>, vector<8x128xf32>
    %c2_i32 = arith.constant 2 : i32
    %29 = vector.broadcast %c2_i32 : i32 to vector<8x128xi32>
    %30 = arith.cmpi sge, %16, %29 : vector<8x128xi32>
    %c2_i32_9 = arith.constant 2 : i32
    %31 = tpu.dynamic_rotate %23 by %c2_i32_9 dim 1 : vector<8x128xf32>, i32 -> vector<8x128xf32>
    %cst_10 = arith.constant 0.000000e+00 : f32
    %32 = vector.broadcast %cst_10 : f32 to vector<8x128xf32>
    %33 = arith.select %30, %31, %32 : vector<8x128xi1>, vector<8x128xf32>
    %c3_i32 = arith.constant 3 : i32
    %34 = vector.broadcast %c3_i32 : i32 to vector<8x128xi32>
    %35 = arith.cmpi sge, %16, %34 : vector<8x128xi32>
    %c3_i32_11 = arith.constant 3 : i32
    %36 = tpu.dynamic_rotate %23 by %c3_i32_11 dim 1 : vector<8x128xf32>, i32 -> vector<8x128xf32>
    %cst_12 = arith.constant 0.000000e+00 : f32
    %37 = vector.broadcast %cst_12 : f32 to vector<8x128xf32>
    %38 = arith.select %35, %36, %37 : vector<8x128xi1>, vector<8x128xf32>
    %c4_i32 = arith.constant 4 : i32
    %39 = vector.broadcast %c4_i32 : i32 to vector<8x128xi32>
    %40 = arith.cmpi sge, %16, %39 : vector<8x128xi32>
    %c4_i32_13 = arith.constant 4 : i32
    %41 = tpu.dynamic_rotate %23 by %c4_i32_13 dim 1 : vector<8x128xf32>, i32 -> vector<8x128xf32>
    %cst_14 = arith.constant 0.000000e+00 : f32
    %42 = vector.broadcast %cst_14 : f32 to vector<8x128xf32>
    %43 = arith.select %40, %41, %42 : vector<8x128xi1>, vector<8x128xf32>
    %44 = tpu.concatenate %23, %28, %33, %38, %43, %22 in 0 : vector<8x128xf32>, vector<8x128xf32>, vector<8x128xf32>, vector<8x128xf32>, vector<8x128xf32>, vector<8x128xf32> -> vector<48x128xf32>
    %c0_15 = arith.constant 0 : index
    %c0_16 = arith.constant 0 : index
    %c0_17 = arith.constant 0 : index
    %45 = vector.load %arg2[%c0_15, %c0_16, %c0_17] : memref<2x8x48xf32, #tpu.memory_space<vmem>>, vector<1x8x48xf32>
    %46 = vector.shape_cast %45 : vector<1x8x48xf32> to vector<8x48xf32>
    %cst_18 = arith.constant dense<0.000000e+00> : vector<8x128xf32>
    %47 = tpu.matmul %46, %44, %cst_18 {dimension_numbers = #tpu.dot_dimension_numbers<[1], [0], [0], [1], [0, 0, 1, 1], [], []>} : vector<8x48xf32>, vector<48x128xf32>, vector<8x128xf32> -> vector<8x128xf32>
    %cst_19 = arith.constant 0.000000e+00 : f32
    %48 = vector.broadcast %cst_19 : f32 to vector<8x128xf32>
    %49 = arith.maximumf %47, %48 : vector<8x128xf32>
    %c2_i32_20 = arith.constant 2 : i32
    %50 = vector.broadcast %c2_i32_20 : i32 to vector<8x128xi32>
    %51 = arith.cmpi sge, %16, %50 : vector<8x128xi32>
    %c2_i32_21 = arith.constant 2 : i32
    %52 = tpu.dynamic_rotate %49 by %c2_i32_21 dim 1 : vector<8x128xf32>, i32 -> vector<8x128xf32>
    %cst_22 = arith.constant 0.000000e+00 : f32
    %53 = vector.broadcast %cst_22 : f32 to vector<8x128xf32>
    %54 = arith.select %51, %52, %53 : vector<8x128xi1>, vector<8x128xf32>
    %c4_i32_23 = arith.constant 4 : i32
    %55 = vector.broadcast %c4_i32_23 : i32 to vector<8x128xi32>
    %56 = arith.cmpi sge, %16, %55 : vector<8x128xi32>
    %c4_i32_24 = arith.constant 4 : i32
    %57 = tpu.dynamic_rotate %49 by %c4_i32_24 dim 1 : vector<8x128xf32>, i32 -> vector<8x128xf32>
    %cst_25 = arith.constant 0.000000e+00 : f32
    %58 = vector.broadcast %cst_25 : f32 to vector<8x128xf32>
    %59 = arith.select %56, %57, %58 : vector<8x128xi1>, vector<8x128xf32>
    %c6_i32 = arith.constant 6 : i32
    %60 = vector.broadcast %c6_i32 : i32 to vector<8x128xi32>
    %61 = arith.cmpi sge, %16, %60 : vector<8x128xi32>
    %c6_i32_26 = arith.constant 6 : i32
    %62 = tpu.dynamic_rotate %49 by %c6_i32_26 dim 1 : vector<8x128xf32>, i32 -> vector<8x128xf32>
    %cst_27 = arith.constant 0.000000e+00 : f32
    %63 = vector.broadcast %cst_27 : f32 to vector<8x128xf32>
    %64 = arith.select %61, %62, %63 : vector<8x128xi1>, vector<8x128xf32>
    %c8_i32 = arith.constant 8 : i32
    %65 = vector.broadcast %c8_i32 : i32 to vector<8x128xi32>
    %66 = arith.cmpi sge, %16, %65 : vector<8x128xi32>
    %c8_i32_28 = arith.constant 8 : i32
    %67 = tpu.dynamic_rotate %49 by %c8_i32_28 dim 1 : vector<8x128xf32>, i32 -> vector<8x128xf32>
    %cst_29 = arith.constant 0.000000e+00 : f32
    %68 = vector.broadcast %cst_29 : f32 to vector<8x128xf32>
    %69 = arith.select %66, %67, %68 : vector<8x128xi1>, vector<8x128xf32>
    %70 = tpu.concatenate %49, %54, %59, %64, %69, %22 in 0 : vector<8x128xf32>, vector<8x128xf32>, vector<8x128xf32>, vector<8x128xf32>, vector<8x128xf32>, vector<8x128xf32> -> vector<48x128xf32>
    %c1 = arith.constant 1 : index
    %c0_30 = arith.constant 0 : index
    %c0_31 = arith.constant 0 : index
    %71 = vector.load %arg2[%c1, %c0_30, %c0_31] : memref<2x8x48xf32, #tpu.memory_space<vmem>>, vector<1x8x48xf32>
    %72 = vector.shape_cast %71 : vector<1x8x48xf32> to vector<8x48xf32>
    %cst_32 = arith.constant dense<0.000000e+00> : vector<8x128xf32>
    %73 = tpu.matmul %72, %70, %cst_32 {dimension_numbers = #tpu.dot_dimension_numbers<[1], [0], [0], [1], [0, 0, 1, 1], [], []>} : vector<8x48xf32>, vector<48x128xf32>, vector<8x128xf32> -> vector<8x128xf32>
    %cst_33 = arith.constant 0.000000e+00 : f32
    %74 = vector.broadcast %cst_33 : f32 to vector<8x128xf32>
    %75 = arith.maximumf %73, %74 : vector<8x128xf32>
    %c0_34 = arith.constant 0 : index
    %c0_35 = arith.constant 0 : index
    %76 = vector.load %arg3[%c0_34, %c0_35] : memref<8x128xf32, #tpu.memory_space<vmem>>, vector<8x128xf32>
    tpu.vector_store %arg3[%c0_34, %c0_35], %75 {strides = array<i32>} : memref<8x128xf32, #tpu.memory_space<vmem>>, vector<8x128xf32>,
    return
  }
  func.func @transform_0(%arg0: i32) -> (i32, i32) {
    %c0_i32 = arith.constant 0 : i32
    %c0_i32_0 = arith.constant 0 : i32
    return %c0_i32, %arg0 : i32, i32
  }
  func.func @transform_1(%arg0: i32) -> (i32, i32, i32) {
    %c0_i32 = arith.constant 0 : i32
    %c0_i32_0 = arith.constant 0 : i32
    %c0_i32_1 = arith.constant 0 : i32
    %c0_i32_2 = arith.constant 0 : i32
    return %c0_i32, %c0_i32_0, %c0_i32_1 : i32, i32, i32
  }
  func.func @transform_2(%arg0: i32) -> (i32, i32) {
    %c0_i32 = arith.constant 0 : i32
    %c0_i32_0 = arith.constant 0 : i32
    return %c0_i32, %arg0 : i32, i32
  }
}

</mosaic_0001>

<llo_original>
// kernel: mstcn_forward.1
$region0: #{mstcn_forward.1}
  #allocation0 [shape = 'u32[]', space=smem, size = 0x4, offset = 0x4, fixed_abs, tag = 'smem constant byte address 0x4 - core index']
  #allocation1 [shape = 'u32[144,128]{1,0:T(1,128)}', space=vmem, size = 0x12000, scoped, tag = 'internal scratch']
  %s0 = inlined_call_operand.vmem [shape: f32[8,128], index: 0, kind: input, shape index: {}]
  %s1 = inlined_call_operand.vmem [shape: f32[2,8,48], index: 1, kind: input, shape index: {}]
  %s2 = inlined_call_operand.vmem [shape: f32[8,128], index: 2, kind: output, shape index: {}]
  %s3 = sld [smem:[#allocation0]]
  $region18: #{mstcn_forward.1} parent=0
    _
  %s5 = ssub.s32 1, %s3
  %s6 = scalar_select 0, %s5, %s3
  // Predicated region
  $region2: #{mstcn_forward.1} parent=0 // pred_check
    _
  $region3: #{mstcn_forward.1} parent=0 // pred_check_branch
    %8 = sbr.rel (0) target = $region5
  $region4: #{mstcn_forward.1} parent=0 // pred_region
    _
  $region5: #{mstcn_forward.1} parent=0 // pred_fallthru
    _
  // Predicated region
  $region6: #{mstcn_forward.1} parent=0 // pred_check
    _
  $region7: #{mstcn_forward.1} parent=0 // pred_check_branch
    %10 = sbr.rel (0) target = $region9
  $region8: #{mstcn_forward.1} parent=0 // pred_region
    _
  $region9: #{mstcn_forward.1} parent=0 // pred_fallthru
    _
  %v11 = vlaneseq
  %v12 = vand.u32 %v11, 127
  %vm13 = vcmp.lt.s32.totalorder %v12, 0
  %v14 = vsub.s32 0, %v12
  %v15 = vsel %vm13, %v14, %v12
  %v16 = vshrl.u32 %v15, 4
  %v17 = vand.u32 %v15, 15
  %v18 = vsub.s32 0, %v17
  %v19 = vsel %vm13, %v18, %v17
  %vm20 = vcmp.ne.s32.totalorder %v19, 0
  %vm21 = vcmp.lt.s32.totalorder %v19, 0
  %vm22 = vmand %vm21, %vm20
  %v23 = vadd.s32 %v19, 16
  %v24 = vsel %vm22, %v23, %v19
  %v25 = vlaneseq
  %v26 = vshrl.u32 %v25, 7
  %vm27 = vcmp.eq.s32.totalorder %v26, 0
  %v28 = vsel %vm27, 1.0, 0.0
  %v29 = vld [vmem:[%s0] sm:$0xff]
  %vm30 = vcmp.ge.s32.totalorder %v24, 1
  %31 = vrot.lane.b32.xlu0 %v29, 1
  %v32 = vpop.permute.xlu0 %31
  %v33 = vsel %vm30, %v32, 0.0
  %vm34 = vcmp.ge.s32.totalorder %v24, 2
  %35 = vrot.lane.b32.xlu0 %v29, 2
  %v36 = vpop.permute.xlu0 %35
  %v37 = vsel %vm34, %v36, 0.0
  %vm38 = vcmp.ge.s32.totalorder %v24, 3
  %39 = vrot.lane.b32.xlu0 %v29, 3
  %v40 = vpop.permute.xlu0 %39
  %v41 = vsel %vm38, %v40, 0.0
  %vm42 = vcmp.ge.s32.totalorder %v24, 4
  %43 = vrot.lane.b32.xlu0 %v29, 4
  %v44 = vpop.permute.xlu0 %43
  %v45 = vsel %vm42, %v44, 0.0
  %v46 = vld [vmem:[%s1] sm:$0xff]
  %vm47 = vcmask 392192
  %v49 = vsel %vm47, %v46, 0
  %51 = vmatprep.subr.mxu0 0.0
  %52 = vmatpush1.msra.mxu0 0.0
  %53 = vmatprep.subr.mxu0 0.0
  %54 = vmatpush1.msra.mxu0 0.0
  %55 = vmatprep.subr.mxu0 0.0
  %56 = vmatpush1.msra.mxu0 0.0
  %57 = vmatprep.subr.mxu0 0.0
  %58 = vmatpush1.msra.mxu0 0.0
  %59 = vmatprep.subr.mxu0 0.0
  %60 = vmatpush1.msra.mxu0 0.0
  %61 = vmatprep.subr.mxu0 0.0
  %62 = vmatpush1.msra.mxu0 0.0
  %63 = vmatprep.subr.mxu0 0.0
  %64 = vmatpush1.msra.mxu0 0.0
  %65 = vmatprep.subr.mxu0 0.0
  %66 = vmatpush1.msra.mxu0 0.0
  %67 = vmatprep.subr.mxu0 0.0
  %68 = vmatpush1.msra.mxu0 0.0
  %69 = vmatprep.subr.mxu0 0.0
  %70 = vmatpush1.msra.mxu0 0.0
  %71 = vmatprep.subr.mxu0 0.0
  %72 = vmatpush1.msra.mxu0 %v28
  %73 = vmatprep.subr.mxu0 0.0
  %74 = vmatpush1.msra.mxu0 %v45
  %75 = vmatprep.subr.mxu0 0.0
  %76 = vmatpush1.msra.mxu0 %v41
  %77 = vmatprep.subr.mxu0 0.0
  %78 = vmatpush1.msra.mxu0 %v37
  %79 = vmatprep.subr.mxu0 0.0
  %80 = vmatpush1.msra.mxu0 %v33
  %81 = vmatprep.subr.mxu0 0.0
  %82 = vmatpush1.msra.mxu0 %v29
  %83 = vmatprep.subr.mxu0 0.0
  %84 = vmatpush2.msra.mxu0 0.0
  %85 = vmatprep.subr.mxu0 0.0
  %86 = vmatpush2.msra.mxu0 0.0
  %87 = vmatprep.subr.mxu0 0.0
  %88 = vmatpush2.msra.mxu0 0.0
  %89 = vmatprep.subr.mxu0 0.0
  %90 = vmatpush2.msra.mxu0 0.0
  %91 = vmatprep.subr.mxu0 0.0
  %92 = vmatpush2.msra.mxu0 0.0
  %93 = vmatprep.subr.mxu0 0.0
  %94 = vmatpush2.msra.mxu0 0.0
  %95 = vmatprep.subr.mxu0 0.0
  %96 = vmatpush2.msra.mxu0 0.0
  %97 = vmatprep.subr.mxu0 0.0
  %98 = vmatpush2.msra.mxu0 0.0
  %99 = vmatprep.subr.mxu0 0.0
  %100 = vmatpush2.msra.mxu0 0.0
  %101 = vmatprep.subr.mxu0 0.0
  %102 = vmatpush2.msra.mxu0 0.0
  %103 = vmatprep.subr.mxu0 0.0
  %104 = vmatpush2.msra.mxu0 0.0
  %105 = vmatprep.subr.mxu0 0.0
  %106 = vmatpush2.msra.mxu0 0.0
  %107 = vmatprep.subr.mxu0 0.0
  %108 = vmatpush2.msra.mxu0 0.0
  %109 = vmatprep.subr.mxu0 0.0
  %110 = vmatpush2.msra.mxu0 0.0
  %111 = vmatprep.subr.mxu0 0.0
  %112 = vmatpush2.msra.mxu0 0.0
  %113 = vmatprep.subr.mxu0 0.0
  %114 = vmatpush2.msra.mxu0 0.0
  %115 = vmatprep.mubr.f32.mxu0 0.0
  %116 = vmatmul.mubr.f32.gmra.mxu0 %v49
  %v117 = vpop.f32.mrf.mxu0
  %v118 = vadd.f32 0.0, %v117
  %v119 = vpop.f32.mrf.mxu0
  %120 = vdwg.mxu0
  %v121 = vmax.f32 %v118, 0.0
  %122 = vrot.lane.b32.xlu0 %v121, 2
  %v123 = vpop.permute.xlu0 %122
  %v124 = vsel %vm34, %v123, 0.0
  %125 = vrot.lane.b32.xlu0 %v121, 4
  %v126 = vpop.permute.xlu0 %125
  %v127 = vsel %vm42, %v126, 0.0
  %vm128 = vcmp.ge.s32.totalorder %v24, 6
  %129 = vrot.lane.b32.xlu0 %v121, 6
  %v130 = vpop.permute.xlu0 %129
  %v131 = vsel %vm128, %v130, 0.0
  %vm132 = vcmp.ge.s32.totalorder %v24, 8
  %133 = vrot.lane.b32.xlu0 %v121, 8
  %v134 = vpop.permute.xlu0 %133
  %v135 = vsel %vm132, %v134, 0.0
  %s136 = scalar_lea.vmem %s1, 8
  %v137 = vld [vmem:[%s136] sm:$0xff]
  %v139 = vsel %vm47, %v137, 0
  %141 = vmatprep.subr.mxu0 0.0
  %142 = vmatpush1.msra.mxu0 0.0
  %143 = vmatprep.subr.mxu0 0.0
  %144 = vmatpush1.msra.mxu0 0.0
  %145 = vmatprep.subr.mxu0 0.0
  %146 = vmatpush1.msra.mxu0 0.0
  %147 = vmatprep.subr.mxu0 0.0
  %148 = vmatpush1.msra.mxu0 0.0
  %149 = vmatprep.subr.mxu0 0.0
  %150 = vmatpush1.msra.mxu0 0.0
  %151 = vmatprep.subr.mxu0 0.0
  %152 = vmatpush1.msra.mxu0 0.0
  %153 = vmatprep.subr.mxu0 0.0
  %154 = vmatpush1.msra.mxu0 0.0
  %155 = vmatprep.subr.mxu0 0.0
  %156 = vmatpush1.msra.mxu0 0.0
  %157 = vmatprep.subr.mxu0 0.0
  %158 = vmatpush1.msra.mxu0 0.0
  %159 = vmatprep.subr.mxu0 0.0
  %160 = vmatpush1.msra.mxu0 0.0
  %161 = vmatprep.subr.mxu0 0.0
  %162 = vmatpush1.msra.mxu0 %v28
  %163 = vmatprep.subr.mxu0 0.0
  %164 = vmatpush1.msra.mxu0 %v135
  %165 = vmatprep.subr.mxu0 0.0
  %166 = vmatpush1.msra.mxu0 %v131
  %167 = vmatprep.subr.mxu0 0.0
  %168 = vmatpush1.msra.mxu0 %v127
  %169 = vmatprep.subr.mxu0 0.0
  %170 = vmatpush1.msra.mxu0 %v124
  %171 = vmatprep.subr.mxu0 0.0
  %172 = vmatpush1.msra.mxu0 %v121
  %173 = vmatprep.subr.mxu0 0.0
  %174 = vmatpush2.msra.mxu0 0.0
  %175 = vmatprep.subr.mxu0 0.0
  %176 = vmatpush2.msra.mxu0 0.0
  %177 = vmatprep.subr.mxu0 0.0
  %178 = vmatpush2.msra.mxu0 0.0
  %179 = vmatprep.subr.mxu0 0.0
  %180 = vmatpush2.msra.mxu0 0.0
  %181 = vmatprep.subr.mxu0 0.0
  %182 = vmatpush2.msra.mxu0 0.0
  %183 = vmatprep.subr.mxu0 0.0
  %184 = vmatpush2.msra.mxu0 0.0
  %185 = vmatprep.subr.mxu0 0.0
  %186 = vmatpush2.msra.mxu0 0.0
  %187 = vmatprep.subr.mxu0 0.0
  %188 = vmatpush2.msra.mxu0 0.0
  %189 = vmatprep.subr.mxu0 0.0
  %190 = vmatpush2.msra.mxu0 0.0
  %191 = vmatprep.subr.mxu0 0.0
  %192 = vmatpush2.msra.mxu0 0.0
  %193 = vmatprep.subr.mxu0 0.0
  %194 = vmatpush2.msra.mxu0 0.0
  %195 = vmatprep.subr.mxu0 0.0
  %196 = vmatpush2.msra.mxu0 0.0
  %197 = vmatprep.subr.mxu0 0.0
  %198 = vmatpush2.msra.mxu0 0.0
  %199 = vmatprep.subr.mxu0 0.0
  %200 = vmatpush2.msra.mxu0 0.0
  %201 = vmatprep.subr.mxu0 0.0
  %202 = vmatpush2.msra.mxu0 0.0
  %203 = vmatprep.subr.mxu0 0.0
  %204 = vmatpush2.msra.mxu0 0.0
  %205 = vmatprep.mubr.f32.mxu0 0.0
  %206 = vmatmul.mubr.f32.gmra.mxu0 %v139
  %v207 = vpop.f32.mrf.mxu0
  %v208 = vadd.f32 0.0, %v207
  %v209 = vpop.f32.mrf.mxu0
  %210 = vdwg.mxu0
  %v211 = vmax.f32 %v208, 0.0
  %212 = vst [vmem:[%s2] sm:$0xff] %v211
  // Predicated region
  $region10: #{mstcn_forward.1} parent=0 // pred_check
    _
  $region11: #{mstcn_forward.1} parent=0 // pred_check_branch
    %214 = sbr.rel (0) target = $region13
  $region12: #{mstcn_forward.1} parent=0 // pred_region
    _
  $region13: #{mstcn_forward.1} parent=0 // pred_fallthru
    _
  // Predicated region
  $region14: #{mstcn_forward.1} parent=0 // pred_check
    _
  $region15: #{mstcn_forward.1} parent=0 // pred_check_branch
    %216 = sbr.rel (0) target = $region17
  $region16: #{mstcn_forward.1} parent=0 // pred_region
    _
  $region17: #{mstcn_forward.1} parent=0 // pred_fallthru
    _

</llo_original>
